<compile_context>
chip_gen: v7x
topology: tpu7x:2x2x1
jax: 0.10.0
libtpu: 0.0.40
codegen_flags: <defaults>
</compile_context>

<pallas_src>
import functools

import jax
import jax.numpy as jnp
from jax.experimental import pallas as pl
from jax.experimental.pallas import tpu as pltpu

EPS = 1e-6                      # GeM.__init__ eps (overrides gem()'s default 1e-5)
CLAMP_MAX = 10000.0
TARGET_BLOCK_BYTES = 4 << 20    # ~4 MiB of input per grid step
VMEM_LIMIT_BYTES = 32 * 1024 * 1024


def _gem_kernel(p_ref, x_ref, o_ref, acc_ref, *, hw_total, hw_chunk, mask_tail):
    """One grid step.  Axis 0 = row tiles (parallel), axis 1 = H*W chunks (arbitrary).

    p_ref  : (1,) f32 scalar-prefetch param in SMEM.
    x_ref  : (ROW_TILE, HW_CHUNK) tile -- each row is a slice of one (n, c) map.
    o_ref  : (ROW_TILE, 1) per-row GeM result (written on the last chunk step).
    acc_ref: (ROW_TILE, 1) f32 running sum of clamp(x)**p over H*W.
    """
    k = pl.program_id(1)

    @pl.when(k == 0)
    def _():
        acc_ref[...] = jnp.zeros_like(acc_ref)

    p = jnp.maximum(p_ref[0], 0.1).astype(jnp.float32)      # torch.clamp(p, min=0.1)

    x = x_ref[...].astype(jnp.float32)                      # per-tile cast (bf16 -> f32)
    xc = jnp.clip(x, EPS, CLAMP_MAX)                        # clamp(min=eps, max=1e4) > 0
    # Positive domain -> exactly 1 log + 1 mul + 1 exp per element (EUP), no
    # generic-pow sign/zero compares and selects on the VALU.
    xp = jnp.exp(p * jnp.log(xc))
    if mask_tail:
        # Ragged last H*W chunk: zero the out-of-bounds columns so they never
        # pollute in-bounds rows' sums (also neutralises any NaN garbage).
        col = jax.lax.broadcasted_iota(jnp.int32, xp.shape, dimension=1)
        xp = jnp.where(k * hw_chunk + col < hw_total, xp, 0.0)
    acc_ref[...] += jnp.sum(xp, axis=-1, keepdims=True)

    @pl.when(k == pl.num_programs(1) - 1)
    def _():
        m = acc_ref[...] * (1.0 / hw_total)                 # avg_pool2d over (H, W)
        # m >= EPS**p > 0 and 1/p > 0  =>  result positive: torch.abs is a no-op.
        o_ref[...] = jnp.exp(jnp.log(m) * (1.0 / p)).astype(o_ref.dtype)


def _round_up(a, b):
    return -(-a // b) * b


def _num_tensorcores():
    """Best-effort TensorCore count (2 on v7x, 1 on v5e/v6e); defaults to 1."""
    try:
        info = pltpu.get_tpu_info()
    except Exception:
        return 1
    for name in ("num_cores", "core_count", "num_tensorcores",
                 "tensorcore_count", "cores_per_chip", "num_cores_per_chip"):
        v = getattr(info, name, None)
        if isinstance(v, int) and v > 0:
            return v
    return 1


def _pick_tiles(nc, hw, itemsize, max_block_bytes, num_cores):
    """Choose (row_tile, hw_chunk) so one input block is ~max_block_bytes."""
    sublane = max(8, 32 // itemsize)            # 8 rows f32, 16 bf16, 32 int8/fp8
    rows_budget = max_block_bytes // (hw * itemsize)
    if rows_budget >= sublane:
        # Full feature map per row fits the budget: tile rows only.
        row_tile = (rows_budget // sublane) * sublane
        hw_chunk = hw
    else:
        # Large feature map: minimum row tile + lane-aligned H*W chunks (the
        # ragged tail chunk is masked inside the kernel).
        row_tile = sublane
        hw_chunk = max(128, (max_block_bytes // (sublane * itemsize)) // 128 * 128)
        if hw_chunk >= hw:
            hw_chunk = hw                       # full dim is always a legal block
    # Never use more rows per block than (sublane-padded) N*C.
    row_tile = min(row_tile, _round_up(nc, sublane))
    # Only on multi-TensorCore chips (v7x): keep >= 2 row tiles so the "parallel"
    # axis load-balances across cores.  Single-TC v5e/v6e: don't split small work.
    if num_cores >= 2 and nc > sublane:
        row_tile = min(row_tile, _round_up(_round_up(nc, 2) // 2, sublane))
    return int(row_tile), int(hw_chunk)


def gem_pallas(x, p_param, *, max_block_bytes=TARGET_BLOCK_BYTES):
    """GeM forward.  x: (N, C, H, W); p_param: (1,) learnable scalar.
    Returns (N, C, 1, 1) in x.dtype."""
    N, C, H, W = x.shape
    NC, HW = N * C, H * W
    itemsize = x.dtype.itemsize

    # Flatten to (N*C, H*W): a contiguous-dim merge, i.e. a free view -- no copy,
    # no padding, no dtype upcast.  The kernel casts each tile to f32 internally.
    x2d = x.reshape(NC, HW)

    row_tile, hw_chunk = _pick_tiles(NC, HW, itemsize, max_block_bytes,
                                     _num_tensorcores())
    num_row_tiles = pl.cdiv(NC, row_tile)       # ragged last block handled by Pallas
    num_hw_chunks = pl.cdiv(HW, hw_chunk)

    kernel = functools.partial(
        _gem_kernel,
        hw_total=HW,
        hw_chunk=hw_chunk,
        mask_tail=(HW % hw_chunk) != 0,
    )

    out = pl.pallas_call(
        kernel,
        out_shape=jax.ShapeDtypeStruct((NC, 1), x.dtype),
        grid_spec=pltpu.PrefetchScalarGridSpec(
            num_scalar_prefetch=1,              # p lands in SMEM before the grid runs
            grid=(num_row_tiles, num_hw_chunks),
            in_specs=[pl.BlockSpec((row_tile, hw_chunk),
                                   lambda i, k, p_ref: (i, k))],
            out_specs=pl.BlockSpec((row_tile, 1),
                                   lambda i, k, p_ref: (i, 0)),
            scratch_shapes=[pltpu.VMEM((row_tile, 1), jnp.float32)],
        ),
        compiler_params=pltpu.CompilerParams(
            # Row tiles are independent (parallel); H*W chunks accumulate (arbitrary).
            dimension_semantics=("parallel", "arbitrary"),
            vmem_limit_bytes=VMEM_LIMIT_BYTES,
        ),
        cost_estimate=pl.CostEstimate(
            flops=5 * NC * HW,                  # clamp + mul + reduce-add per element
            transcendentals=2 * NC * HW,        # log + exp per element
            bytes_accessed=NC * HW * itemsize + NC * itemsize,
        ),
    )(p_param.astype(jnp.float32), x2d)

    return out.reshape(N, C, 1, 1)


if __name__ == "__main__":
    key = jax.random.PRNGKey(0)
    k1, k2, k3, k4 = jax.random.split(key, 4)

    def reference(x, p_param):
        p_eff = jnp.maximum(p_param[0].astype(jnp.float32), 0.1)
        xc = jnp.clip(x.astype(jnp.float32), EPS, CLAMP_MAX)
        m = jnp.mean(xc ** p_eff, axis=(-2, -1), keepdims=True)
        return jnp.abs(m ** (1.0 / p_eff))

    # Deterministic parameter init matching nn.Parameter(torch.ones(1) * p), p=3.
    p_param = jnp.ones((1,), dtype=jnp.float32) * 3.0

    # Case 1: small NCHW input, single full-HW block.
    x = jax.random.normal(k1, (2, 4, 16, 16), dtype=jnp.float32)
    y = gem_pallas(x, p_param)
    jax.block_until_ready(y)
    assert y.shape == (2, 4, 1, 1)
    assert jnp.allclose(y, reference(x, p_param).astype(y.dtype),
                        rtol=1e-4, atol=1e-6)

    # Case 2: N*C not a multiple of the row tile (ragged last row block, no pad).
    x2 = jax.random.normal(k2, (1, 3, 8, 8), dtype=jnp.float32)
    y2 = gem_pallas(x2, p_param)
    jax.block_until_ready(y2)
    assert y2.shape == (1, 3, 1, 1)
    assert jnp.allclose(y2, reference(x2, p_param).astype(y2.dtype),
                        rtol=1e-4, atol=1e-6)

    # Case 3: force the H*W-chunked reduction path (tiny block budget) with a
    # ragged tail chunk (960 % 128 != 0) and ragged N*C.
    x3 = jax.random.normal(k3, (2, 3, 24, 40), dtype=jnp.float32)
    y3 = gem_pallas(x3, p_param, max_block_bytes=4096)
    jax.block_until_ready(y3)
    assert y3.shape == (2, 3, 1, 1)
    assert jnp.allclose(y3, reference(x3, p_param).astype(y3.dtype),
                        rtol=1e-4, atol=1e-6)

    # Case 4: bf16 input streams in native dtype; kernel computes in f32.
    x4 = jax.random.normal(k4, (2, 4, 16, 16), dtype=jnp.bfloat16)
    y4 = gem_pallas(x4, p_param)
    jax.block_until_ready(y4)
    assert y4.shape == (2, 4, 1, 1)
    assert jnp.allclose(y4.astype(jnp.float32), reference(x4, p_param),
                        rtol=2e-2, atol=1e-3)

    print("KERNEL_OK")
</pallas_src>

<mosaic_0001>
module attributes {stable_mosaic.version = 11 : i64} {
  func.func @_gem_kernel(%arg0: i32, %arg1: i32, %arg2: memref<1xf32, #tpu.memory_space<smem>>, %arg3: memref<8x256xf32, #tpu.memory_space<vmem>>, %arg4: memref<8x1xf32, #tpu.memory_space<vmem>>, %arg5: memref<8x1xf32, #tpu.memory_space<vmem>>) attributes {dimension_semantics = [#tpu.dimension_semantics<parallel>, #tpu.dimension_semantics<arbitrary>], iteration_bounds = array<i64: 1, 1>, scalar_prefetch = 1 : i64, scratch_operands = 1 : i64, tpu.core_type = #tpu.core_type<tc>, window_params = [{transform_indices = @transform_0, window_bounds = array<i64: 8, 256>}, {transform_indices = @transform_1, window_bounds = array<i64: 8, 1>}]} {
    %c0_i32 = arith.constant 0 : i32
    %0 = arith.cmpi eq, %arg1, %c0_i32 : i32
    %1 = arith.extui %0 : i1 to i32
    %c0_i32_0 = arith.constant 0 : i32
    %2 = arith.cmpi ne, %1, %c0_i32_0 : i32
    scf.if %2 {
      %cst_12 = arith.constant 0.000000e+00 : f32
      %22 = vector.broadcast %cst_12 : f32 to vector<8x1xf32>
      %c0_13 = arith.constant 0 : index
      %c0_14 = arith.constant 0 : index
      %23 = vector.load %arg5[%c0_13, %c0_14] : memref<8x1xf32, #tpu.memory_space<vmem>>, vector<8x1xf32>
      tpu.vector_store %arg5[%c0_13, %c0_14], %22 {strides = array<i32>} : memref<8x1xf32, #tpu.memory_space<vmem>>, vector<8x1xf32>,
    } else {
    }
    %c0 = arith.constant 0 : index
    %3 = memref.load %arg2[%c0] : memref<1xf32, #tpu.memory_space<smem>>
    %cst = arith.constant 1.000000e-01 : f32
    %4 = arith.maximumf %3, %cst : f32
    %c0_1 = arith.constant 0 : index
    %c0_2 = arith.constant 0 : index
    %5 = vector.load %arg3[%c0_1, %c0_2] : memref<8x256xf32, #tpu.memory_space<vmem>>, vector<8x256xf32>
    %cst_3 = arith.constant 9.99999997E-7 : f32
    %cst_4 = arith.constant 1.000000e+04 : f32
    %6 = vector.broadcast %cst_3 : f32 to vector<8x256xf32>
    %7 = arith.maximumf %6, %5 : vector<8x256xf32>
    %8 = vector.broadcast %cst_4 : f32 to vector<8x256xf32>
    %9 = arith.minimumf %8, %7 : vector<8x256xf32>
    %10 = math.log %9 : vector<8x256xf32>
    %11 = vector.broadcast %4 : f32 to vector<8x256xf32>
    %12 = arith.mulf %11, %10 : vector<8x256xf32>
    %13 = math.exp %12 : vector<8x256xf32>
    %c0_5 = arith.constant 0 : index
    %c0_6 = arith.constant 0 : index
    %14 = vector.load %arg5[%c0_5, %c0_6] : memref<8x1xf32, #tpu.memory_space<vmem>>, vector<8x1xf32>
    %cst_7 = arith.constant dense<0.000000e+00> : vector<8xf32>
    %15 = vector.multi_reduction <add>, %13, %cst_7 [1] : vector<8x256xf32> to vector<8xf32>
    %16 = vector.shape_cast %15 : vector<8xf32> to vector<8x1xf32>
    %17 = arith.addf %14, %16 : vector<8x1xf32>
    %c0_8 = arith.constant 0 : index
    %c0_9 = arith.constant 0 : index
    %18 = vector.load %arg5[%c0_8, %c0_9] : memref<8x1xf32, #tpu.memory_space<vmem>>, vector<8x1xf32>
    tpu.vector_store %arg5[%c0_8, %c0_9], %17 {strides = array<i32>} : memref<8x1xf32, #tpu.memory_space<vmem>>, vector<8x1xf32>,
    %c0_i32_10 = arith.constant 0 : i32
    %19 = arith.cmpi eq, %arg1, %c0_i32_10 : i32
    %20 = arith.extui %19 : i1 to i32
    %c0_i32_11 = arith.constant 0 : i32
    %21 = arith.cmpi ne, %20, %c0_i32_11 : i32
    scf.if %21 {
      %c0_12 = arith.constant 0 : index
      %c0_13 = arith.constant 0 : index
      %22 = vector.load %arg5[%c0_12, %c0_13] : memref<8x1xf32, #tpu.memory_space<vmem>>, vector<8x1xf32>
      %cst_14 = arith.constant 3.906250e-03 : f32
      %23 = vector.broadcast %cst_14 : f32 to vector<8x1xf32>
      %24 = arith.mulf %22, %23 : vector<8x1xf32>
      %25 = math.log %24 : vector<8x1xf32>
      %cst_15 = arith.constant 1.000000e+00 : f32
      %26 = arith.divf %cst_15, %4 : f32
      %27 = vector.broadcast %26 : f32 to vector<8x1xf32>
      %28 = arith.mulf %25, %27 : vector<8x1xf32>
      %29 = math.exp %28 : vector<8x1xf32>
      %c0_16 = arith.constant 0 : index
      %c0_17 = arith.constant 0 : index
      %30 = vector.load %arg4[%c0_16, %c0_17] : memref<8x1xf32, #tpu.memory_space<vmem>>, vector<8x1xf32>
      tpu.vector_store %arg4[%c0_16, %c0_17], %29 {strides = array<i32>} : memref<8x1xf32, #tpu.memory_space<vmem>>, vector<8x1xf32>,
    } else {
    }
    return
  }
  func.func @transform_0(%arg0: i32, %arg1: i32, %arg2: memref<1xf32, #tpu.memory_space<smem>>) -> (i32, i32) {
    %c0_i32 = arith.constant 0 : i32
    return %arg0, %arg1 : i32, i32
  }
  func.func @transform_1(%arg0: i32, %arg1: i32, %arg2: memref<1xf32, #tpu.memory_space<smem>>) -> (i32, i32) {
    %c0_i32 = arith.constant 0 : i32
    %c0_i32_0 = arith.constant 0 : i32
    return %arg0, %c0_i32 : i32, i32
  }
}

</mosaic_0001>

<llo_original>
// kernel: tpu_custom_call.1
$region0: #{tpu_custom_call.1}
  #allocation0 [shape = 'u32[]', space=smem, size = 0x4, offset = 0x4, fixed_abs, tag = 'smem constant byte address 0x4 - core index']
  #allocation1 [shape = 'u32[144,128]{1,0:T(1,128)}', space=vmem, size = 0x12000, scoped, tag = 'internal scratch']
  #allocation2 [shape = 'f32[8,1]{1,0:T(8,128)}', space=vmem, size = 0x1000, scoped, tag = 'scratch operand']
  #allocation3 [shape = 's32[1]{0}', space=sflag, size = 0x4, scoped, tag = 'scoped memory for tpu_custom_call.1']
  #allocation4 [shape = 'f32[1]{0:T(128)S(6)}', space=smem, size = 0x200, scoped, tag = 'prefetched SMEM operand 0']
  %s0 = inlined_call_operand.<no memory space> [shape: f32[1], index: 0, kind: input, shape index: {}]
  %s1 = inlined_call_operand.hbm [shape: f32[8,256], index: 1, kind: input, shape index: {}]
  %s2 = inlined_call_operand.vmem [shape: f32[8,1], index: 2, kind: output, shape index: {}]
  %s3 = sld [smem:[#allocation0]]
  $region26: #{tpu_custom_call.1} parent=0
    _
  %s5 = ssub.s32 1, %s3
  %s6 = scalar_select 0, %s5, %s3
  %7 = sst [smem:[#allocation4]] %s0
  $region1: #{tpu_custom_call.1} parent=0
    #allocation5 [shape = 'u8[8192]{0}', space=vmem, size = 0x2000, scoped, tag = 'input window, operand 1, single buffered']
    #allocation6 [shape = 's32[1]{0}', space=sflag, size = 0x4, scoped, tag = 'scoped memory for tpu_custom_call.1']
    %8 = vsyncpa [#allocation6], 0
    // Predicated region
    $region2: #{tpu_custom_call.1} parent=1 // pred_check
      _
    $region3: #{tpu_custom_call.1} parent=1 // pred_check_branch
      %10 = sbr.rel (0) target = $region5
    $region4: #{tpu_custom_call.1} parent=1 // pred_region
      %s12 = ssub.s32 256, 256
      %13 = vsyncadd [#allocation6], %s12
      %s15 = sshll.u32 [#allocation5], 4
      %s16 = int_to_ptr.vmem [resolvable:$true] %s15
      %18 = dma.hbm_to_vmem [thread:$0]  %s1, 256, %s16, [#allocation6]
    $region5: #{tpu_custom_call.1} parent=1 // pred_fallthru
      _
    // Predicated region
    $region6: #{tpu_custom_call.1} parent=1 // pred_check
      _
    $region7: #{tpu_custom_call.1} parent=1 // pred_check_branch
      %20 = sbr.rel (0) target = $region9
    $region8: #{tpu_custom_call.1} parent=1 // pred_region
      %21 = dma.done [#allocation6], 256
    $region9: #{tpu_custom_call.1} parent=1 // pred_fallthru
      _
    %p22 = scmp.eq.s32.totalorder 0, 0
    // Predicated region
    $region10: #{tpu_custom_call.1} parent=1 // pred_check
      %p23 = pneg %p22
    $region11: #{tpu_custom_call.1} parent=1 // pred_check_branch
      %25 = sbr.rel (%p23) target = $region13
    $region12: #{tpu_custom_call.1} parent=1 // pred_region
      %vm26 = vcmask 7168
      %27 = vst.msk [vmem:[#allocation2] sm:$0xff] %vm26, 0.0
    $region13: #{tpu_custom_call.1} parent=1 // pred_fallthru
      _
    %s28 = sld [smem:[#allocation4]]
    %s29 = smax.f32 %s28, 0.1
    %v30 = vld [vmem:[#allocation5] sm:$0xff]
    %v31 = vld [vmem:[#allocation5 + $0x8] sm:$0xff]
    %v32 = vmax.f32 %v30, 1e-06
    %v33 = vmax.f32 %v31, 1e-06
    %v34 = vmin.f32 %v32, 10000.0
    %v35 = vmin.f32 %v33, 10000.0
    %v36 = vlog2.pop %v34
    %v37 = vmul.f32 %v36, 0.6931472
    %v38 = vlog2.pop %v35
    %v39 = vmul.f32 %v38, 0.6931472
    %v40 = vstv %s29
    %v41 = vmul.f32 %v40, %v37
    %v42 = vmul.f32 %v40, %v39
    %v43 = vmul.f32 %v41, 1.442695
    %v44 = vpow.pop %v43
    %v45 = vmul.f32 %v42, 1.442695
    %v46 = vpow.pop %v45
    %v47 = vld [vmem:[#allocation2] sm:$0xff]
    %v48 = vadd.f32 %v44, %v46
    %49 = vadd.xlane.f32.xlu0 %v48
    %v50 = vpop.xlane.xlu0 %49
    %v51 = vadd.f32 %v47, %v50
    %vm52 = vcmask 7168
    %53 = vst.msk [vmem:[#allocation2] sm:$0xff] %vm52, %v51
    // Predicated region
    $region14: #{tpu_custom_call.1} parent=1 // pred_check
      %p54 = pneg %p22
    $region15: #{tpu_custom_call.1} parent=1 // pred_check_branch
      %56 = sbr.rel (%p54) target = $region17
    $region16: #{tpu_custom_call.1} parent=1 // pred_region
      %v57 = vld [vmem:[#allocation2] sm:$0xff]
      %v58 = vmul.f32 %v57, 0.00390625
      %v59 = vlog2.pop %v58
      %v60 = vmul.f32 %v59, 0.6931472
      %v61 = vstv %s29
      %v62 = vrcp.pop %v61
      %s63 = vtos %v62
      %v64 = vstv %s63
      %v65 = vmul.f32 %v60, %v64
      %v66 = vmul.f32 %v65, 1.442695
      %v67 = vpow.pop %v66
      %68 = vst.msk [vmem:[%s2] sm:$0xff] %vm52, %v67
    $region17: #{tpu_custom_call.1} parent=1 // pred_fallthru
      _
    // Predicated region
    $region18: #{tpu_custom_call.1} parent=1 // pred_check
      _
    $region19: #{tpu_custom_call.1} parent=1 // pred_check_branch
      %70 = sbr.rel (0) target = $region21
    $region20: #{tpu_custom_call.1} parent=1 // pred_region
      _
    $region21: #{tpu_custom_call.1} parent=1 // pred_fallthru
      _
    // Predicated region
    $region22: #{tpu_custom_call.1} parent=1 // pred_check
      _
    $region23: #{tpu_custom_call.1} parent=1 // pred_check_branch
      %72 = sbr.rel (0) target = $region25
    $region24: #{tpu_custom_call.1} parent=1 // pred_region
      _
    $region25: #{tpu_custom_call.1} parent=1 // pred_fallthru
      _
    %73 = vsyncpa [#allocation6], 1

</llo_original>
